<compile_context>
chip_gen: v7x
topology: tpu7x:2x2x1
jax: 0.10.0
libtpu: 0.0.40
codegen_flags: <defaults>
</compile_context>

<pallas_src>
import functools

import jax
import jax.numpy as jnp
from jax.experimental import pallas as pl
from jax.experimental.pallas import tpu as pltpu


def _round_up(x, m):
    return ((x + m - 1) // m) * m


def _fused_conv_kernel(p_ref, w1_ref, b1_ref, w2_ref, b2_ref, o_ref, *,
                       num_taps, m2_pad):
    # p_ref : (num_taps*m2_pad, K1) bf16   conv1 im2col rows; one contiguous
    #                                      m2_pad-row block per conv2 tap,
    #                                      rows within a block = conv2 pixels
    # w1_ref: (K1, C1p) bf16               conv1 weight (K unpadded, Cout padded)
    # b1_ref: (1, C1p)  f32
    # w2_ref: (num_taps*C1p, C2p) bf16     conv2 weight, taps stacked along K
    # b2_ref: (1, C2p)  f32
    # o_ref : (m2_pad, C2p) f32            conv2 output pixels (lane-dense)

    # conv1: one MXU matmul over every (conv2-tap, conv2-pixel) patch row.
    h1 = jnp.dot(p_ref[...], w1_ref[...], preferred_element_type=jnp.float32)
    h1 = jnp.maximum(h1 + b1_ref[...], 0.0)          # (num_taps*m2_pad, C1p)

    # (9, m2p, C1p) -> (m2p, 9*C1p) "transpose", expressed as sublane-aligned
    # static slices + one 128-lane-aligned concat, then a single bf16 cast.
    blocks = [h1[t * m2_pad:(t + 1) * m2_pad, :] for t in range(num_taps)]
    lhs2 = jnp.concatenate(blocks, axis=-1).astype(jnp.bfloat16)

    # conv2: a single MXU matmul with K = num_taps*C1p (one fill/drain).
    out = jnp.dot(lhs2, w2_ref[...], preferred_element_type=jnp.float32)
    o_ref[...] = jnp.maximum(out + b2_ref[...], 0.0)   # fused bias + ReLU


def init_params(key, in_ch):
    # Deterministic synthetic parameters (PyTorch Conv2d weight layout = OIHW).
    k1, k2, k3, k4 = jax.random.split(key, 4)
    return dict(
        w1=jax.random.normal(k1, (2 * in_ch, in_ch, 3, 3), jnp.float32) * 0.1,
        b1=jax.random.normal(k2, (2 * in_ch,), jnp.float32) * 0.05,
        w2=jax.random.normal(k3, (4 * in_ch, 2 * in_ch, 3, 3), jnp.float32) * 0.1,
        b2=jax.random.normal(k4, (4 * in_ch,), jnp.float32) * 0.05,
    )


def prepare_params(params):
    """One-time repack of OIHW params into MXU-ready bf16 operands."""
    c1, cin, _, _ = params["w1"].shape            # (2*in_ch, in_ch, 3, 3)
    c2 = params["w2"].shape[0]                    # 4*in_ch
    k1 = 9 * cin                                  # conv1 contraction (unpadded)
    c1p = _round_up(c1, 128)
    c2p = _round_up(c2, 128)
    # conv1: OIHW -> (kh1, kw1, cin, cout) -> (9*cin, cout); pad Cout only.
    w1 = jnp.transpose(params["w1"], (2, 3, 1, 0)).reshape(k1, c1)
    w1 = jnp.pad(w1, ((0, 0), (0, c1p - c1))).astype(jnp.bfloat16)
    b1 = jnp.pad(params["b1"], (0, c1p - c1)).reshape(1, c1p).astype(jnp.float32)
    # conv2: OIHW -> (kh2, kw2, c1, cout) -> (9, c1p, c2p) -> stacked along K
    # so row index = tap*c1p + c1_in, matching the kernel's lane-concat order.
    w2 = jnp.transpose(params["w2"], (2, 3, 1, 0)).reshape(9, c1, c2)
    w2 = jnp.pad(w2, ((0, 0), (0, c1p - c1), (0, c2p - c2)))
    w2 = w2.reshape(9 * c1p, c2p).astype(jnp.bfloat16)
    b2 = jnp.pad(params["b2"], (0, c2p - c2)).reshape(1, c2p).astype(jnp.float32)
    return dict(w1=w1, b1=b1, w2=w2, b2=b2)


def encoder2conv_forward(x_nchw, prepped):
    n, cin, hh, ww = x_nchw.shape
    ho1, wo1 = (hh - 3) // 2 + 1, (ww - 3) // 2 + 1    # conv1 output size
    ho2, wo2 = (ho1 - 3) // 2 + 1, (wo1 - 3) // 2 + 1  # conv2 output size
    c2 = 4 * cin
    k1 = 9 * cin
    m2 = n * ho2 * wo2                    # number of conv2 output pixels
    m2p = _round_up(m2, 8)                # sublane-aligned per-tap block rows
    c1p = prepped["w1"].shape[1]
    c2p = prepped["w2"].shape[1]

    # ---- conv1 im2col from static strided slices only (no gather, no K pad) --
    x = jnp.transpose(x_nchw, (0, 2, 3, 1)).astype(jnp.bfloat16)   # NHWC bf16
    cols = [x[:, kh:kh + 2 * ho1 - 1:2, kw:kw + 2 * wo1 - 1:2, :]
            for kh in range(3) for kw in range(3)]
    p1 = jnp.concatenate(cols, axis=-1)          # (n, ho1, wo1, 9*cin)

    # Regroup rows per conv2 tap: block t = kh2*3 + kw2 holds the conv1 patch
    # row feeding that tap for every conv2 output pixel (n, oh2, ow2).
    taps = [p1[:, kh:kh + 2 * ho2 - 1:2, kw:kw + 2 * wo2 - 1:2, :].reshape(m2, k1)
            for kh in range(3) for kw in range(3)]
    patches = jnp.stack(taps, axis=0)            # (9, m2, k1)
    patches = jnp.pad(patches, ((0, 0), (0, m2p - m2), (0, 0)))   # tail-only pad
    patches = patches.reshape(9 * m2p, k1)       # (9*m2p, 9*cin) bf16

    kernel = functools.partial(_fused_conv_kernel, num_taps=9, m2_pad=m2p)
    out = pl.pallas_call(
        kernel,
        out_shape=jax.ShapeDtypeStruct((m2p, c2p), jnp.float32),
        grid=(1,),
        in_specs=[
            pl.BlockSpec((9 * m2p, k1), lambda i: (0, 0)),
            pl.BlockSpec((k1, c1p), lambda i: (0, 0)),
            pl.BlockSpec((1, c1p), lambda i: (0, 0)),
            pl.BlockSpec((9 * c1p, c2p), lambda i: (0, 0)),
            pl.BlockSpec((1, c2p), lambda i: (0, 0)),
        ],
        out_specs=pl.BlockSpec((m2p, c2p), lambda i: (0, 0)),
        compiler_params=pltpu.CompilerParams(
            dimension_semantics=("arbitrary",)),
    )(patches, prepped["w1"], prepped["b1"], prepped["w2"], prepped["b2"])

    out = out[:m2, :c2].reshape(n, ho2, wo2, c2)      # strip tail padding
    return jnp.transpose(out, (0, 3, 1, 2))           # NHWC -> NCHW


def reference_forward(x_nchw, params):
    def conv(x, w, b):
        y = jax.lax.conv_general_dilated(
            x, w, window_strides=(2, 2), padding="VALID",
            dimension_numbers=("NCHW", "OIHW", "NCHW"),
            precision=jax.lax.Precision.HIGHEST)
        return jax.nn.relu(y + b[None, :, None, None])
    h = conv(x_nchw, params["w1"], params["b1"])
    h = conv(h, params["w2"], params["b2"])
    return jax.nn.relu(h)


if __name__ == "__main__":
    key = jax.random.PRNGKey(0)
    kx, kp = jax.random.split(key)

    in_ch = 4
    x = jax.random.normal(kx, (2, in_ch, 16, 16), jnp.float32)   # NCHW
    params = init_params(kp, in_ch)
    prepped = prepare_params(params)       # hoisted out of the forward path

    fwd = jax.jit(encoder2conv_forward)
    out = jax.block_until_ready(fwd(x, prepped))

    ref = reference_forward(x, params)
    assert out.shape == (2, 4 * in_ch, 3, 3), out.shape
    # bf16 operands vs f32 HIGHEST reference; 2e-2 covers bf16 rounding.
    assert jnp.allclose(out, ref, atol=2e-2, rtol=2e-2), (
        float(jnp.max(jnp.abs(out - ref))))
    print("KERNEL_OK")
</pallas_src>

<mosaic_0001>
module attributes {stable_mosaic.version = 11 : i64} {
  func.func @_fused_conv_kernel(%arg0: i32, %arg1: memref<216x36xbf16, #tpu.memory_space<vmem>>, %arg2: memref<36x128xbf16, #tpu.memory_space<vmem>>, %arg3: memref<1x128xf32, #tpu.memory_space<vmem>>, %arg4: memref<1152x128xbf16, #tpu.memory_space<vmem>>, %arg5: memref<1x128xf32, #tpu.memory_space<vmem>>, %arg6: memref<24x128xf32, #tpu.memory_space<vmem>>) attributes {dimension_semantics = [#tpu.dimension_semantics<arbitrary>], iteration_bounds = array<i64: 1>, scalar_prefetch = 0 : i64, scratch_operands = 0 : i64, tpu.core_type = #tpu.core_type<tc>, window_params = [{pipeline_mode = #tpu.pipeline_mode<synchronous>, transform_indices = @transform_0, window_bounds = array<i64: 216, 36>}, {pipeline_mode = #tpu.pipeline_mode<synchronous>, transform_indices = @transform_1, window_bounds = array<i64: 36, 128>}, {pipeline_mode = #tpu.pipeline_mode<synchronous>, transform_indices = @transform_2, window_bounds = array<i64: 1, 128>}, {pipeline_mode = #tpu.pipeline_mode<synchronous>, transform_indices = @transform_3, window_bounds = array<i64: 1152, 128>}, {pipeline_mode = #tpu.pipeline_mode<synchronous>, transform_indices = @transform_4, window_bounds = array<i64: 1, 128>}, {pipeline_mode = #tpu.pipeline_mode<synchronous>, transform_indices = @transform_5, window_bounds = array<i64: 24, 128>}]} {
    %c0 = arith.constant 0 : index
    %c0_0 = arith.constant 0 : index
    %0 = vector.load %arg1[%c0, %c0_0] : memref<216x36xbf16, #tpu.memory_space<vmem>>, vector<216x36xbf16>
    %c0_1 = arith.constant 0 : index
    %c0_2 = arith.constant 0 : index
    %1 = vector.load %arg2[%c0_1, %c0_2] : memref<36x128xbf16, #tpu.memory_space<vmem>>, vector<36x128xbf16>
    %cst = arith.constant dense<0.000000e+00> : vector<216x128xf32>
    %2 = tpu.matmul %0, %1, %cst {dimension_numbers = #tpu.dot_dimension_numbers<[1], [0], [0], [1], [0, 0, 1, 1], [], []>} : vector<216x36xbf16>, vector<36x128xbf16>, vector<216x128xf32> -> vector<216x128xf32>
    %c0_3 = arith.constant 0 : index
    %c0_4 = arith.constant 0 : index
    %3 = vector.load %arg3[%c0_3, %c0_4] : memref<1x128xf32, #tpu.memory_space<vmem>>, vector<1x128xf32>
    %4 = vector.broadcast %3 : vector<1x128xf32> to vector<216x128xf32>
    %5 = arith.addf %2, %4 : vector<216x128xf32>
    %cst_5 = arith.constant 0.000000e+00 : f32
    %6 = vector.broadcast %cst_5 : f32 to vector<216x128xf32>
    %7 = arith.maximumf %5, %6 : vector<216x128xf32>
    %8 = vector.extract_strided_slice %7 {offsets = [0, 0], sizes = [24, 128], strides = [1, 1]} : vector<216x128xf32> to vector<24x128xf32>
    %9 = vector.extract_strided_slice %7 {offsets = [24, 0], sizes = [24, 128], strides = [1, 1]} : vector<216x128xf32> to vector<24x128xf32>
    %10 = vector.extract_strided_slice %7 {offsets = [48, 0], sizes = [24, 128], strides = [1, 1]} : vector<216x128xf32> to vector<24x128xf32>
    %11 = vector.extract_strided_slice %7 {offsets = [72, 0], sizes = [24, 128], strides = [1, 1]} : vector<216x128xf32> to vector<24x128xf32>
    %12 = vector.extract_strided_slice %7 {offsets = [96, 0], sizes = [24, 128], strides = [1, 1]} : vector<216x128xf32> to vector<24x128xf32>
    %13 = vector.extract_strided_slice %7 {offsets = [120, 0], sizes = [24, 128], strides = [1, 1]} : vector<216x128xf32> to vector<24x128xf32>
    %14 = vector.extract_strided_slice %7 {offsets = [144, 0], sizes = [24, 128], strides = [1, 1]} : vector<216x128xf32> to vector<24x128xf32>
    %15 = vector.extract_strided_slice %7 {offsets = [168, 0], sizes = [24, 128], strides = [1, 1]} : vector<216x128xf32> to vector<24x128xf32>
    %16 = vector.extract_strided_slice %7 {offsets = [192, 0], sizes = [24, 128], strides = [1, 1]} : vector<216x128xf32> to vector<24x128xf32>
    %17 = tpu.concatenate %8, %9, %10, %11, %12, %13, %14, %15, %16 in 1 : vector<24x128xf32>, vector<24x128xf32>, vector<24x128xf32>, vector<24x128xf32>, vector<24x128xf32>, vector<24x128xf32>, vector<24x128xf32>, vector<24x128xf32>, vector<24x128xf32> -> vector<24x1152xf32>
    %18 = arith.truncf %17 : vector<24x1152xf32> to vector<24x1152xbf16>
    %c0_6 = arith.constant 0 : index
    %c0_7 = arith.constant 0 : index
    %19 = vector.load %arg4[%c0_6, %c0_7] : memref<1152x128xbf16, #tpu.memory_space<vmem>>, vector<1152x128xbf16>
    %cst_8 = arith.constant dense<0.000000e+00> : vector<24x128xf32>
    %20 = tpu.matmul %18, %19, %cst_8 {dimension_numbers = #tpu.dot_dimension_numbers<[1], [0], [0], [1], [0, 0, 1, 1], [], []>} : vector<24x1152xbf16>, vector<1152x128xbf16>, vector<24x128xf32> -> vector<24x128xf32>
    %c0_9 = arith.constant 0 : index
    %c0_10 = arith.constant 0 : index
    %21 = vector.load %arg5[%c0_9, %c0_10] : memref<1x128xf32, #tpu.memory_space<vmem>>, vector<1x128xf32>
    %22 = vector.broadcast %21 : vector<1x128xf32> to vector<24x128xf32>
    %23 = arith.addf %20, %22 : vector<24x128xf32>
    %cst_11 = arith.constant 0.000000e+00 : f32
    %24 = vector.broadcast %cst_11 : f32 to vector<24x128xf32>
    %25 = arith.maximumf %23, %24 : vector<24x128xf32>
    %c0_12 = arith.constant 0 : index
    %c0_13 = arith.constant 0 : index
    %26 = vector.load %arg6[%c0_12, %c0_13] : memref<24x128xf32, #tpu.memory_space<vmem>>, vector<24x128xf32>
    tpu.vector_store %arg6[%c0_12, %c0_13], %25 {strides = array<i32>} : memref<24x128xf32, #tpu.memory_space<vmem>>, vector<24x128xf32>,
    return
  }
  func.func @transform_0(%arg0: i32) -> (i32, i32) {
    %c0_i32 = arith.constant 0 : i32
    %c0_i32_0 = arith.constant 0 : i32
    %c0_i32_1 = arith.constant 0 : i32
    return %c0_i32, %c0_i32_0 : i32, i32
  }
  func.func @transform_1(%arg0: i32) -> (i32, i32) {
    %c0_i32 = arith.constant 0 : i32
    %c0_i32_0 = arith.constant 0 : i32
    %c0_i32_1 = arith.constant 0 : i32
    return %c0_i32, %c0_i32_0 : i32, i32
  }
  func.func @transform_2(%arg0: i32) -> (i32, i32) {
    %c0_i32 = arith.constant 0 : i32
    %c0_i32_0 = arith.constant 0 : i32
    %c0_i32_1 = arith.constant 0 : i32
    return %c0_i32, %c0_i32_0 : i32, i32
  }
  func.func @transform_3(%arg0: i32) -> (i32, i32) {
    %c0_i32 = arith.constant 0 : i32
    %c0_i32_0 = arith.constant 0 : i32
    %c0_i32_1 = arith.constant 0 : i32
    return %c0_i32, %c0_i32_0 : i32, i32
  }
  func.func @transform_4(%arg0: i32) -> (i32, i32) {
    %c0_i32 = arith.constant 0 : i32
    %c0_i32_0 = arith.constant 0 : i32
    %c0_i32_1 = arith.constant 0 : i32
    return %c0_i32, %c0_i32_0 : i32, i32
  }
  func.func @transform_5(%arg0: i32) -> (i32, i32) {
    %c0_i32 = arith.constant 0 : i32
    %c0_i32_0 = arith.constant 0 : i32
    %c0_i32_1 = arith.constant 0 : i32
    return %c0_i32, %c0_i32_0 : i32, i32
  }
}

</mosaic_0001>

<llo_original>
// kernel: encoder2conv_forward.1
$region0: #{encoder2conv_forward.1}
  #allocation0 [shape = 'u32[]', space=smem, size = 0x4, offset = 0x4, fixed_abs, tag = 'smem constant byte address 0x4 - core index']
  #allocation1 [shape = 'u32[144,128]{1,0:T(1,128)}', space=vmem, size = 0x12000, scoped, tag = 'internal scratch']
  %s0 = inlined_call_operand.vmem [shape: bf16[216,36], index: 0, kind: input, shape index: {}]
  %s1 = inlined_call_operand.vmem [shape: bf16[36,128], index: 1, kind: input, shape index: {}]
  %s2 = inlined_call_operand.vmem [shape: f32[1,128], index: 2, kind: input, shape index: {}]
  %s3 = inlined_call_operand.vmem [shape: bf16[1152,128], index: 3, kind: input, shape index: {}]
  %s4 = inlined_call_operand.vmem [shape: f32[1,128], index: 4, kind: input, shape index: {}]
  %s5 = inlined_call_operand.vmem [shape: f32[24,128], index: 5, kind: output, shape index: {}]
  %s6 = sld [smem:[#allocation0]]
  $region30: #{encoder2conv_forward.1} parent=0
    _
  %s8 = ssub.s32 1, %s6
  %s9 = scalar_select 0, %s8, %s6
  // Predicated region
  $region2: #{encoder2conv_forward.1} parent=0 // pred_check
    _
  $region3: #{encoder2conv_forward.1} parent=0 // pred_check_branch
    %11 = sbr.rel (0) target = $region5
  $region4: #{encoder2conv_forward.1} parent=0 // pred_region
    _
  $region5: #{encoder2conv_forward.1} parent=0 // pred_fallthru
    _
  // Predicated region
  $region6: #{encoder2conv_forward.1} parent=0 // pred_check
    _
  $region7: #{encoder2conv_forward.1} parent=0 // pred_check_branch
    %13 = sbr.rel (0) target = $region9
  $region8: #{encoder2conv_forward.1} parent=0 // pred_region
    _
  $region9: #{encoder2conv_forward.1} parent=0 // pred_fallthru
    _
  // Predicated region
  $region10: #{encoder2conv_forward.1} parent=0 // pred_check
    _
  $region11: #{encoder2conv_forward.1} parent=0 // pred_check_branch
    %15 = sbr.rel (0) target = $region13
  $region12: #{encoder2conv_forward.1} parent=0 // pred_region
    _
  $region13: #{encoder2conv_forward.1} parent=0 // pred_fallthru
    _
  // Predicated region
  $region14: #{encoder2conv_forward.1} parent=0 // pred_check
    _
  $region15: #{encoder2conv_forward.1} parent=0 // pred_check_branch
    %17 = sbr.rel (0) target = $region17
  $region16: #{encoder2conv_forward.1} parent=0 // pred_region
    _
  $region17: #{encoder2conv_forward.1} parent=0 // pred_fallthru
    _
  // Predicated region
  $region18: #{encoder2conv_forward.1} parent=0 // pred_check
    _
  $region19: #{encoder2conv_forward.1} parent=0 // pred_check_branch
    %19 = sbr.rel (0) target = $region21
  $region20: #{encoder2conv_forward.1} parent=0 // pred_region
    _
  $region21: #{encoder2conv_forward.1} parent=0 // pred_fallthru
    _
  %v21 = vld [vmem:[%s0] sm:$0xf]
  %v22 = vld [vmem:[%s0 + $0x4] sm:$0xf]
  %v23 = vld [vmem:[%s0 + $0x8] sm:$0xf]
  %v24 = vld [vmem:[%s0 + $0xc] sm:$0xf]
  %v25 = vld [vmem:[%s0 + $0x10] sm:$0xf]
  %v26 = vld [vmem:[%s0 + $0x14] sm:$0xf]
  %v27 = vld [vmem:[%s0 + $0x18] sm:$0xf]
  %v28 = vld [vmem:[%s0 + $0x1c] sm:$0xf]
  %v29 = vld [vmem:[%s0 + $0x20] sm:$0xf]
  %v30 = vld [vmem:[%s0 + $0x24] sm:$0xf]
  %v31 = vld [vmem:[%s0 + $0x28] sm:$0xf]
  %v32 = vld [vmem:[%s0 + $0x2c] sm:$0xf]
  %v33 = vld [vmem:[%s0 + $0x30] sm:$0xf]
  %v34 = vld [vmem:[%s0 + $0x34] sm:$0xf]
  %v35 = vld [vmem:[%s0 + $0x38] sm:$0xf]
  %v36 = vld [vmem:[%s0 + $0x3c] sm:$0xf]
  %v37 = vld [vmem:[%s0 + $0x40] sm:$0xf]
  %v38 = vld [vmem:[%s0 + $0x44] sm:$0xf]
  %v39 = vld [vmem:[%s0 + $0x48] sm:$0xf]
  %v40 = vld [vmem:[%s0 + $0x4c] sm:$0xf]
  %v41 = vld [vmem:[%s0 + $0x50] sm:$0xf]
  %v42 = vld [vmem:[%s0 + $0x54] sm:$0xf]
  %v43 = vld [vmem:[%s0 + $0x58] sm:$0xf]
  %v44 = vld [vmem:[%s0 + $0x5c] sm:$0xf]
  %v45 = vld [vmem:[%s0 + $0x60] sm:$0xf]
  %v46 = vld [vmem:[%s0 + $0x64] sm:$0xf]
  %v47 = vld [vmem:[%s0 + $0x68] sm:$0xf]
  %v48 = vld [vmem:[%s1] sm:$0xf]
  %v49 = vld [vmem:[%s1 + $0x4] sm:$0xf]
  %v50 = vld [vmem:[%s1 + $0x8] sm:$0xf]
  %v51 = vld [vmem:[%s1 + $0xc] sm:$0xf]
  %v52 = vld [vmem:[%s1 + $0x10] sm:$0x3]
  %v53 = vld [vmem:[%s2] sm:$0x1]
  %v55 = vlaneseq
  %v56 = vshrl.u32 %v55, 7
  %v57 = vsub.s32 0, %v56
  %v58 = vrot.slane %v53, %v57
  %v87 = vunpack.c.l.b16 %v21
  %v88 = vunpack.c.l.b16 %v22
  %v89 = vunpack.c.l.b16 %v23
  %v90 = vunpack.c.l.b16 %v24
  %v91 = vunpack.c.l.b16 %v25
  %v92 = vunpack.c.l.b16 %v26
  %v93 = vunpack.c.l.b16 %v27
  %v94 = vunpack.c.l.b16 %v28
  %v95 = vunpack.c.l.b16 %v29
  %v96 = vunpack.c.l.b16 %v30
  %v97 = vunpack.c.l.b16 %v31
  %v98 = vunpack.c.l.b16 %v32
  %v99 = vunpack.c.l.b16 %v33
  %v100 = vunpack.c.l.b16 %v34
  %v101 = vunpack.c.l.b16 %v35
  %v102 = vunpack.c.l.b16 %v36
  %v103 = vunpack.c.l.b16 %v37
  %v104 = vunpack.c.l.b16 %v38
  %v105 = vunpack.c.l.b16 %v39
  %v106 = vunpack.c.l.b16 %v40
  %v107 = vunpack.c.l.b16 %v41
  %v108 = vunpack.c.l.b16 %v42
  %v109 = vunpack.c.l.b16 %v43
  %v110 = vunpack.c.l.b16 %v44
  %v111 = vunpack.c.l.b16 %v45
  %v112 = vunpack.c.l.b16 %v46
  %v113 = vunpack.c.l.b16 %v47
  %v114 = vpack.c.b16 %v88, %v87
  %v115 = vpack.c.b16 %v90, %v89
  %v116 = vpack.c.b16 %v92, %v91
  %v117 = vpack.c.b16 %v94, %v93
  %v118 = vpack.c.b16 %v96, %v95
  %v119 = vpack.c.b16 %v98, %v97
  %v120 = vpack.c.b16 %v100, %v99
  %v121 = vpack.c.b16 %v102, %v101
  %v122 = vpack.c.b16 %v104, %v103
  %v123 = vpack.c.b16 %v106, %v105
  %v124 = vpack.c.b16 %v108, %v107
  %v125 = vpack.c.b16 %v110, %v109
  %v126 = vpack.c.b16 %v112, %v111
  %v127 = vpack.c.b16 %v113, %v113
  %v133 = vunpack.c.l.b16 %v48
  %v134 = vunpack.c.l.b16 %v49
  %v135 = vunpack.c.l.b16 %v50
  %v136 = vunpack.c.l.b16 %v51
  %v137 = vunpack.c.l.b16 %v52
  %v138 = vpack.c.b16 %v134, %v133
  %v139 = vpack.c.b16 %v136, %v135
  %v140 = vpack.c.b16 %v137, %v137
  %vm143 = vcmask 293888
  %v145 = vsel %vm143, %v114, 0
  %v148 = vsel %vm143, %v115, 0
  %v151 = vsel %vm143, %v116, 0
  %v154 = vsel %vm143, %v117, 0
  %v157 = vsel %vm143, %v118, 0
  %v160 = vsel %vm143, %v119, 0
  %v163 = vsel %vm143, %v120, 0
  %v166 = vsel %vm143, %v121, 0
  %v169 = vsel %vm143, %v122, 0
  %v172 = vsel %vm143, %v123, 0
  %v175 = vsel %vm143, %v124, 0
  %v178 = vsel %vm143, %v125, 0
  %v181 = vsel %vm143, %v126, 0
  %v184 = vsel %vm143, %v127, 0
  %vm186 = vcmask 1041408
  %v188 = vsel %vm186, %v140, 0
  %190 = vmatprep.subr.bf16.mxu0 0
  %191 = vmatpush1.bf16.msra.mxu0 %v138
  %192 = vmatprep.subr.bf16.mxu0 0
  %193 = vmatpush1.bf16.msra.mxu0 %v139
  %194 = vmatprep.subr.bf16.mxu0 0
  %195 = vmatpush1.bf16.msra.mxu0 %v188
  %196 = vmatprep.subr.bf16.mxu0 0
  %197 = vmatpush1.bf16.msra.mxu0 0
  %198 = vmatprep.subr.bf16.mxu0 0
  %199 = vmatpush1.bf16.msra.mxu0 0
  %200 = vmatprep.subr.bf16.mxu0 0
  %201 = vmatpush1.bf16.msra.mxu0 0
  %202 = vmatprep.subr.bf16.mxu0 0
  %203 = vmatpush1.bf16.msra.mxu0 0
  %204 = vmatprep.subr.bf16.mxu0 0
  %205 = vmatpush1.bf16.msra.mxu0 0
  %206 = vmatprep.subr.bf16.mxu0 0
  %207 = vmatpush1.bf16.msra.mxu0 0
  %208 = vmatprep.subr.bf16.mxu0 0
  %209 = vmatpush1.bf16.msra.mxu0 0
  %210 = vmatprep.subr.bf16.mxu0 0
  %211 = vmatpush1.bf16.msra.mxu0 0
  %212 = vmatprep.subr.bf16.mxu0 0
  %213 = vmatpush1.bf16.msra.mxu0 0
  %214 = vmatprep.subr.bf16.mxu0 0
  %215 = vmatpush1.bf16.msra.mxu0 0
  %216 = vmatprep.subr.bf16.mxu0 0
  %217 = vmatpush1.bf16.msra.mxu0 0
  %218 = vmatprep.subr.bf16.mxu0 0
  %219 = vmatpush1.bf16.msra.mxu0 0
  %220 = vmatprep.subr.bf16.mxu0 0
  %221 = vmatpush1.bf16.msra.mxu0 0
  %222 = vmatprep.mubr.bf16.mxu0 0
  %223 = vmatmul.mubr.bf16.gmra.mrb[0].mxu0 %v145
  %v224 = vpop.f32.mrb[0].mxu0
  %v225 = vadd.f32 %v58, %v224
  %v226 = vpop.f32.mrb[0].mxu0
  %v227 = vpop.f32.mrb[0].mxu0
  %v228 = vadd.f32 %v58, %v227
  %v229 = vpop.f32.mrb[0].mxu0
  %230 = vmatprep.mubr.bf16.mxu0 0
  %231 = vmatmul.mubr.bf16.gmra.mrb[0].mxu0 %v148
  %v232 = vpop.f32.mrb[0].mxu0
  %v233 = vadd.f32 %v58, %v232
  %v234 = vpop.f32.mrb[0].mxu0
  %v235 = vpop.f32.mrb[0].mxu0
  %v236 = vadd.f32 %v58, %v235
  %v237 = vpop.f32.mrb[0].mxu0
  %238 = vmatprep.mubr.bf16.mxu0 0
  %239 = vmatmul.mubr.bf16.gmra.mrb[0].mxu0 %v151
  %v240 = vpop.f32.mrb[0].mxu0
  %v241 = vadd.f32 %v58, %v240
  %v242 = vpop.f32.mrb[0].mxu0
  %v243 = vpop.f32.mrb[0].mxu0
  %v244 = vadd.f32 %v58, %v243
  %v245 = vpop.f32.mrb[0].mxu0
  %246 = vmatprep.mubr.bf16.mxu0 0
  %247 = vmatmul.mubr.bf16.gmra.mrb[0].mxu0 %v154
  %v248 = vpop.f32.mrb[0].mxu0
  %v249 = vadd.f32 %v58, %v248
  %v250 = vpop.f32.mrb[0].mxu0
  %v251 = vpop.f32.mrb[0].mxu0
  %v252 = vadd.f32 %v58, %v251
  %v253 = vpop.f32.mrb[0].mxu0
  %254 = vmatprep.mubr.bf16.mxu0 0
  %255 = vmatmul.mubr.bf16.gmra.mrb[0].mxu0 %v157
  %v256 = vpop.f32.mrb[0].mxu0
  %v257 = vadd.f32 %v58, %v256
  %v258 = vpop.f32.mrb[0].mxu0
  %v259 = vpop.f32.mrb[0].mxu0
  %v260 = vadd.f32 %v58, %v259
  %v261 = vpop.f32.mrb[0].mxu0
  %262 = vmatprep.mubr.bf16.mxu0 0
  %263 = vmatmul.mubr.bf16.gmra.mrb[0].mxu0 %v160
  %v264 = vpop.f32.mrb[0].mxu0
  %v265 = vadd.f32 %v58, %v264
  %v266 = vpop.f32.mrb[0].mxu0
  %v267 = vpop.f32.mrb[0].mxu0
  %v268 = vadd.f32 %v58, %v267
  %v269 = vpop.f32.mrb[0].mxu0
  %270 = vmatprep.mubr.bf16.mxu0 0
  %271 = vmatmul.mubr.bf16.gmra.mrb[0].mxu0 %v163
  %v272 = vpop.f32.mrb[0].mxu0
  %v273 = vadd.f32 %v58, %v272
  %v274 = vpop.f32.mrb[0].mxu0
  %v275 = vpop.f32.mrb[0].mxu0
  %v276 = vadd.f32 %v58, %v275
  %v277 = vpop.f32.mrb[0].mxu0
  %278 = vmatprep.mubr.bf16.mxu0 0
  %279 = vmatmul.mubr.bf16.gmra.mrb[0].mxu0 %v166
  %v280 = vpop.f32.mrb[0].mxu0
  %v281 = vadd.f32 %v58, %v280
  %v282 = vpop.f32.mrb[0].mxu0
  %v283 = vpop.f32.mrb[0].mxu0
  %v284 = vadd.f32 %v58, %v283
  %v285 = vpop.f32.mrb[0].mxu0
  %286 = vmatprep.mubr.bf16.mxu0 0
  %287 = vmatmul.mubr.bf16.gmra.mrb[0].mxu0 %v169
  %v288 = vpop.f32.mrb[0].mxu0
  %v289 = vadd.f32 %v58, %v288
  %v290 = vpop.f32.mrb[0].mxu0
  %v291 = vpop.f32.mrb[0].mxu0
  %v292 = vadd.f32 %v58, %v291
  %v293 = vpop.f32.mrb[0].mxu0
  %294 = vmatprep.mubr.bf16.mxu0 0
  %295 = vmatmul.mubr.bf16.gmra.mrb[0].mxu0 %v172
  %v296 = vpop.f32.mrb[0].mxu0
  %v297 = vadd.f32 %v58, %v296
  %v298 = vpop.f32.mrb[0].mxu0
  %v299 = vpop.f32.mrb[0].mxu0
  %v300 = vadd.f32 %v58, %v299
  %v301 = vpop.f32.mrb[0].mxu0
  %302 = vmatprep.mubr.bf16.mxu0 0
  %303 = vmatmul.mubr.bf16.gmra.mrb[0].mxu0 %v175
  %v304 = vpop.f32.mrb[0].mxu0
  %v305 = vadd.f32 %v58, %v304
  %v306 = vpop.f32.mrb[0].mxu0
  %v307 = vpop.f32.mrb[0].mxu0
  %v308 = vadd.f32 %v58, %v307
  %v309 = vpop.f32.mrb[0].mxu0
  %310 = vmatprep.mubr.bf16.mxu0 0
  %311 = vmatmul.mubr.bf16.gmra.mrb[0].mxu0 %v178
  %v312 = vpop.f32.mrb[0].mxu0
  %v313 = vadd.f32 %v58, %v312
  %v314 = vpop.f32.mrb[0].mxu0
  %v315 = vpop.f32.mrb[0].mxu0
  %v316 = vadd.f32 %v58, %v315
  %v317 = vpop.f32.mrb[0].mxu0
  %318 = vmatprep.mubr.bf16.mxu0 0
  %319 = vmatmul.mubr.bf16.gmra.mrb[0].mxu0 %v181
  %v320 = vpop.f32.mrb[0].mxu0
  %v321 = vadd.f32 %v58, %v320
  %v322 = vpop.f32.mrb[0].mxu0
  %v323 = vpop.f32.mrb[0].mxu0
  %v324 = vadd.f32 %v58, %v323
  %v325 = vpop.f32.mrb[0].mxu0
  %326 = vmatprep.mubr.bf16.mxu0 0
  %327 = vmatmul.mubr.bf16.gmra.mrb[0].mxu0 %v184
  %v328 = vpop.f32.mrb[0].mxu0
  %v329 = vadd.f32 %v58, %v328
  %v330 = vpop.f32.mrb[0].mxu0
  %v331 = vpop.f32.mrb[0].mxu0
  %v332 = vpop.f32.mrb[0].mxu0
  %333 = vdwg.mxu0
  %v334 = vmax.f32 %v225, 0.0
  %v335 = vmax.f32 %v228, 0.0
  %v336 = vmax.f32 %v233, 0.0
  %v337 = vmax.f32 %v236, 0.0
  %v338 = vmax.f32 %v241, 0.0
  %v339 = vmax.f32 %v244, 0.0
  %v340 = vmax.f32 %v249, 0.0
  %v341 = vmax.f32 %v252, 0.0
  %v342 = vmax.f32 %v257, 0.0
  %v343 = vmax.f32 %v260, 0.0
  %v344 = vmax.f32 %v265, 0.0
  %v345 = vmax.f32 %v268, 0.0
  %v346 = vmax.f32 %v273, 0.0
  %v347 = vmax.f32 %v276, 0.0
  %v348 = vmax.f32 %v281, 0.0
  %v349 = vmax.f32 %v284, 0.0
  %v350 = vmax.f32 %v289, 0.0
  %v351 = vmax.f32 %v292, 0.0
  %v352 = vmax.f32 %v297, 0.0
  %v353 = vmax.f32 %v300, 0.0
  %v354 = vmax.f32 %v305, 0.0
  %v355 = vmax.f32 %v308, 0.0
  %v356 = vmax.f32 %v313, 0.0
  %v357 = vmax.f32 %v316, 0.0
  %v358 = vmax.f32 %v321, 0.0
  %v359 = vmax.f32 %v324, 0.0
  %v360 = vmax.f32 %v329, 0.0
  %v361 = vpack.c.bf16 %v335, %v334
  %v362 = vpack.c.bf16 %v338, %v337
  %v363 = vpack.c.bf16 %v341, %v340
  %v364 = vpack.c.bf16 %v344, %v343
  %v365 = vpack.c.bf16 %v347, %v346
  %v366 = vpack.c.bf16 %v350, %v349
  %v367 = vpack.c.bf16 %v353, %v352
  %v368 = vpack.c.bf16 %v356, %v355
  %v369 = vpack.c.bf16 %v359, %v358
  %v370 = vpack.c.bf16 %v336, %v336
  %v371 = vpack.c.bf16 %v339, %v339
  %v372 = vpack.c.bf16 %v342, %v342
  %v373 = vpack.c.bf16 %v345, %v345
  %v374 = vpack.c.bf16 %v348, %v348
  %v375 = vpack.c.bf16 %v351, %v351
  %v376 = vpack.c.bf16 %v354, %v354
  %v377 = vpack.c.bf16 %v357, %v357
  %v378 = vpack.c.bf16 %v360, %v360
  %v379 = vld [vmem:[%s3] sm:$0xf]
  %v380 = vld [vmem:[%s3 + $0x4] sm:$0xf]
  %v381 = vld [vmem:[%s3 + $0x8] sm:$0xf]
  %v382 = vld [vmem:[%s3 + $0xc] sm:$0xf]
  %v383 = vld [vmem:[%s3 + $0x10] sm:$0xf]
  %v384 = vld [vmem:[%s3 + $0x14] sm:$0xf]
  %v385 = vld [vmem:[%s3 + $0x18] sm:$0xf]
  %v386 = vld [vmem:[%s3 + $0x1c] sm:$0xf]
  %v387 = vld [vmem:[%s3 + $0x20] sm:$0xf]
  %v388 = vld [vmem:[%s3 + $0x24] sm:$0xf]
  %v389 = vld [vmem:[%s3 + $0x28] sm:$0xf]
  %v390 = vld [vmem:[%s3 + $0x2c] sm:$0xf]
  %v391 = vld [vmem:[%s3 + $0x30] sm:$0xf]
  %v392 = vld [vmem:[%s3 + $0x34] sm:$0xf]
  %v393 = vld [vmem:[%s3 + $0x38] sm:$0xf]
  %v394 = vld [vmem:[%s3 + $0x3c] sm:$0xf]
  %v395 = vld [vmem:[%s3 + $0x40] sm:$0xf]
  %v396 = vld [vmem:[%s3 + $0x44] sm:$0xf]
  %v397 = vld [vmem:[%s3 + $0x48] sm:$0xf]
  %v398 = vld [vmem:[%s3 + $0x4c] sm:$0xf]
  %v399 = vld [vmem:[%s3 + $0x50] sm:$0xf]
  %v400 = vld [vmem:[%s3 + $0x54] sm:$0xf]
  %v401 = vld [vmem:[%s3 + $0x58] sm:$0xf]
  %v402 = vld [vmem:[%s3 + $0x5c] sm:$0xf]
  %v403 = vld [vmem:[%s3 + $0x60] sm:$0xf]
  %v404 = vld [vmem:[%s3 + $0x64] sm:$0xf]
  %v405 = vld [vmem:[%s3 + $0x68] sm:$0xf]
  %v406 = vld [vmem:[%s3 + $0x6c] sm:$0xf]
  %v407 = vld [vmem:[%s3 + $0x70] sm:$0xf]
  %v408 = vld [vmem:[%s3 + $0x74] sm:$0xf]
  %v409 = vld [vmem:[%s3 + $0x78] sm:$0xf]
  %v410 = vld [vmem:[%s3 + $0x7c] sm:$0xf]
  %v411 = vld [vmem:[%s3 + $0x80] sm:$0xf]
  %v412 = vld [vmem:[%s3 + $0x84] sm:$0xf]
  %v413 = vld [vmem:[%s3 + $0x88] sm:$0xf]
  %v414 = vld [vmem:[%s3 + $0x8c] sm:$0xf]
  %v415 = vld [vmem:[%s3 + $0x90] sm:$0xf]
  %v416 = vld [vmem:[%s3 + $0x94] sm:$0xf]
  %v417 = vld [vmem:[%s3 + $0x98] sm:$0xf]
  %v418 = vld [vmem:[%s3 + $0x9c] sm:$0xf]
  %v419 = vld [vmem:[%s3 + $0xa0] sm:$0xf]
  %v420 = vld [vmem:[%s3 + $0xa4] sm:$0xf]
  %v421 = vld [vmem:[%s3 + $0xa8] sm:$0xf]
  %v422 = vld [vmem:[%s3 + $0xac] sm:$0xf]
  %v423 = vld [vmem:[%s3 + $0xb0] sm:$0xf]
  %v424 = vld [vmem:[%s3 + $0xb4] sm:$0xf]
  %v425 = vld [vmem:[%s3 + $0xb8] sm:$0xf]
  %v426 = vld [vmem:[%s3 + $0xbc] sm:$0xf]
  %v427 = vld [vmem:[%s3 + $0xc0] sm:$0xf]
  %v428 = vld [vmem:[%s3 + $0xc4] sm:$0xf]
  %v429 = vld [vmem:[%s3 + $0xc8] sm:$0xf]
  %v430 = vld [vmem:[%s3 + $0xcc] sm:$0xf]
  %v431 = vld [vmem:[%s3 + $0xd0] sm:$0xf]
  %v432 = vld [vmem:[%s3 + $0xd4] sm:$0xf]
  %v433 = vld [vmem:[%s3 + $0xd8] sm:$0xf]
  %v434 = vld [vmem:[%s3 + $0xdc] sm:$0xf]
  %v435 = vld [vmem:[%s3 + $0xe0] sm:$0xf]
  %v436 = vld [vmem:[%s3 + $0xe4] sm:$0xf]
  %v437 = vld [vmem:[%s3 + $0xe8] sm:$0xf]
  %v438 = vld [vmem:[%s3 + $0xec] sm:$0xf]
  %v439 = vld [vmem:[%s3 + $0xf0] sm:$0xf]
  %v440 = vld [vmem:[%s3 + $0xf4] sm:$0xf]
  %v441 = vld [vmem:[%s3 + $0xf8] sm:$0xf]
  %v442 = vld [vmem:[%s3 + $0xfc] sm:$0xf]
  %v443 = vld [vmem:[%s3 + $0x100] sm:$0xf]
  %v444 = vld [vmem:[%s3 + $0x104] sm:$0xf]
  %v445 = vld [vmem:[%s3 + $0x108] sm:$0xf]
  %v446 = vld [vmem:[%s3 + $0x10c] sm:$0xf]
  %v447 = vld [vmem:[%s3 + $0x110] sm:$0xf]
  %v448 = vld [vmem:[%s3 + $0x114] sm:$0xf]
  %v449 = vld [vmem:[%s3 + $0x118] sm:$0xf]
  %v450 = vld [vmem:[%s3 + $0x11c] sm:$0xf]
  %v451 = vld [vmem:[%s3 + $0x120] sm:$0xf]
  %v452 = vld [vmem:[%s3 + $0x124] sm:$0xf]
  %v453 = vld [vmem:[%s3 + $0x128] sm:$0xf]
  %v454 = vld [vmem:[%s3 + $0x12c] sm:$0xf]
  %v455 = vld [vmem:[%s3 + $0x130] sm:$0xf]
  %v456 = vld [vmem:[%s3 + $0x134] sm:$0xf]
  %v457 = vld [vmem:[%s3 + $0x138] sm:$0xf]
  %v458 = vld [vmem:[%s3 + $0x13c] sm:$0xf]
  %v459 = vld [vmem:[%s3 + $0x140] sm:$0xf]
  %v460 = vld [vmem:[%s3 + $0x144] sm:$0xf]
  %v461 = vld [vmem:[%s3 + $0x148] sm:$0xf]
  %v462 = vld [vmem:[%s3 + $0x14c] sm:$0xf]
  %v463 = vld [vmem:[%s3 + $0x150] sm:$0xf]
  %v464 = vld [vmem:[%s3 + $0x154] sm:$0xf]
  %v465 = vld [vmem:[%s3 + $0x158] sm:$0xf]
  %v466 = vld [vmem:[%s3 + $0x15c] sm:$0xf]
  %v467 = vld [vmem:[%s3 + $0x160] sm:$0xf]
  %v468 = vld [vmem:[%s3 + $0x164] sm:$0xf]
  %v469 = vld [vmem:[%s3 + $0x168] sm:$0xf]
  %v470 = vld [vmem:[%s3 + $0x16c] sm:$0xf]
  %v471 = vld [vmem:[%s3 + $0x170] sm:$0xf]
  %v472 = vld [vmem:[%s3 + $0x174] sm:$0xf]
  %v473 = vld [vmem:[%s3 + $0x178] sm:$0xf]
  %v474 = vld [vmem:[%s3 + $0x17c] sm:$0xf]
  %v475 = vld [vmem:[%s3 + $0x180] sm:$0xf]
  %v476 = vld [vmem:[%s3 + $0x184] sm:$0xf]
  %v477 = vld [vmem:[%s3 + $0x188] sm:$0xf]
  %v478 = vld [vmem:[%s3 + $0x18c] sm:$0xf]
  %v479 = vld [vmem:[%s3 + $0x190] sm:$0xf]
  %v480 = vld [vmem:[%s3 + $0x194] sm:$0xf]
  %v481 = vld [vmem:[%s3 + $0x198] sm:$0xf]
  %v482 = vld [vmem:[%s3 + $0x19c] sm:$0xf]
  %v483 = vld [vmem:[%s3 + $0x1a0] sm:$0xf]
  %v484 = vld [vmem:[%s3 + $0x1a4] sm:$0xf]
  %v485 = vld [vmem:[%s3 + $0x1a8] sm:$0xf]
  %v486 = vld [vmem:[%s3 + $0x1ac] sm:$0xf]
  %v487 = vld [vmem:[%s3 + $0x1b0] sm:$0xf]
  %v488 = vld [vmem:[%s3 + $0x1b4] sm:$0xf]
  %v489 = vld [vmem:[%s3 + $0x1b8] sm:$0xf]
  %v490 = vld [vmem:[%s3 + $0x1bc] sm:$0xf]
  %v491 = vld [vmem:[%s3 + $0x1c0] sm:$0xf]
  %v492 = vld [vmem:[%s3 + $0x1c4] sm:$0xf]
  %v493 = vld [vmem:[%s3 + $0x1c8] sm:$0xf]
  %v494 = vld [vmem:[%s3 + $0x1cc] sm:$0xf]
  %v495 = vld [vmem:[%s3 + $0x1d0] sm:$0xf]
  %v496 = vld [vmem:[%s3 + $0x1d4] sm:$0xf]
  %v497 = vld [vmem:[%s3 + $0x1d8] sm:$0xf]
  %v498 = vld [vmem:[%s3 + $0x1dc] sm:$0xf]
  %v499 = vld [vmem:[%s3 + $0x1e0] sm:$0xf]
  %v500 = vld [vmem:[%s3 + $0x1e4] sm:$0xf]
  %v501 = vld [vmem:[%s3 + $0x1e8] sm:$0xf]
  %v502 = vld [vmem:[%s3 + $0x1ec] sm:$0xf]
  %v503 = vld [vmem:[%s3 + $0x1f0] sm:$0xf]
  %v504 = vld [vmem:[%s3 + $0x1f4] sm:$0xf]
  %v505 = vld [vmem:[%s3 + $0x1f8] sm:$0xf]
  %v506 = vld [vmem:[%s3 + $0x1fc] sm:$0xf]
  %v507 = vld [vmem:[%s3 + $0x200] sm:$0xf]
  %v508 = vld [vmem:[%s3 + $0x204] sm:$0xf]
  %v509 = vld [vmem:[%s3 + $0x208] sm:$0xf]
  %v510 = vld [vmem:[%s3 + $0x20c] sm:$0xf]
  %v511 = vld [vmem:[%s3 + $0x210] sm:$0xf]
  %v512 = vld [vmem:[%s3 + $0x214] sm:$0xf]
  %v513 = vld [vmem:[%s3 + $0x218] sm:$0xf]
  %v514 = vld [vmem:[%s3 + $0x21c] sm:$0xf]
  %v515 = vld [vmem:[%s3 + $0x220] sm:$0xf]
  %v516 = vld [vmem:[%s3 + $0x224] sm:$0xf]
  %v517 = vld [vmem:[%s3 + $0x228] sm:$0xf]
  %v518 = vld [vmem:[%s3 + $0x22c] sm:$0xf]
  %v519 = vld [vmem:[%s3 + $0x230] sm:$0xf]
  %v520 = vld [vmem:[%s3 + $0x234] sm:$0xf]
  %v521 = vld [vmem:[%s3 + $0x238] sm:$0xf]
  %v522 = vld [vmem:[%s3 + $0x23c] sm:$0xf]
  %v523 = vld [vmem:[%s4] sm:$0x1]
  %v525 = vlaneseq
  %v526 = vshrl.u32 %v525, 7
  %v527 = vsub.s32 0, %v526
  %v528 = vrot.slane %v523, %v527
  %v674 = vunpack.c.l.b16 %v379
  %v675 = vunpack.c.l.b16 %v380
  %v676 = vunpack.c.l.b16 %v381
  %v677 = vunpack.c.l.b16 %v382
  %v678 = vunpack.c.l.b16 %v383
  %v679 = vunpack.c.l.b16 %v384
  %v680 = vunpack.c.l.b16 %v385
  %v681 = vunpack.c.l.b16 %v386
  %v682 = vunpack.c.l.b16 %v387
  %v683 = vunpack.c.l.b16 %v388
  %v684 = vunpack.c.l.b16 %v389
  %v685 = vunpack.c.l.b16 %v390
  %v686 = vunpack.c.l.b16 %v391
  %v687 = vunpack.c.l.b16 %v392
  %v688 = vunpack.c.l.b16 %v393
  %v689 = vunpack.c.l.b16 %v394
  %v690 = vunpack.c.l.b16 %v395
  %v691 = vunpack.c.l.b16 %v396
  %v692 = vunpack.c.l.b16 %v397
  %v693 = vunpack.c.l.b16 %v398
  %v694 = vunpack.c.l.b16 %v399
  %v695 = vunpack.c.l.b16 %v400
  %v696 = vunpack.c.l.b16 %v401
  %v697 = vunpack.c.l.b16 %v402
  %v698 = vunpack.c.l.b16 %v403
  %v699 = vunpack.c.l.b16 %v404
  %v700 = vunpack.c.l.b16 %v405
  %v701 = vunpack.c.l.b16 %v406
  %v702 = vunpack.c.l.b16 %v407
  %v703 = vunpack.c.l.b16 %v408
  %v704 = vunpack.c.l.b16 %v409
  %v705 = vunpack.c.l.b16 %v410
  %v706 = vunpack.c.l.b16 %v411
  %v707 = vunpack.c.l.b16 %v412
  %v708 = vunpack.c.l.b16 %v413
  %v709 = vunpack.c.l.b16 %v414
  %v710 = vunpack.c.l.b16 %v415
  %v711 = vunpack.c.l.b16 %v416
  %v712 = vunpack.c.l.b16 %v417
  %v713 = vunpack.c.l.b16 %v418
  %v714 = vunpack.c.l.b16 %v419
  %v715 = vunpack.c.l.b16 %v420
  %v716 = vunpack.c.l.b16 %v421
  %v717 = vunpack.c.l.b16 %v422
  %v718 = vunpack.c.l.b16 %v423
  %v719 = vunpack.c.l.b16 %v424
  %v720 = vunpack.c.l.b16 %v425
  %v721 = vunpack.c.l.b16 %v426
  %v722 = vunpack.c.l.b16 %v427
  %v723 = vunpack.c.l.b16 %v428
  %v724 = vunpack.c.l.b16 %v429
  %v725 = vunpack.c.l.b16 %v430
  %v726 = vunpack.c.l.b16 %v431
  %v727 = vunpack.c.l.b16 %v432
  %v728 = vunpack.c.l.b16 %v433
  %v729 = vunpack.c.l.b16 %v434
  %v730 = vunpack.c.l.b16 %v435
  %v731 = vunpack.c.l.b16 %v436
  %v732 = vunpack.c.l.b16 %v437
  %v733 = vunpack.c.l.b16 %v438
  %v734 = vunpack.c.l.b16 %v439
  %v735 = vunpack.c.l.b16 %v440
  %v736 = vunpack.c.l.b16 %v441
  %v737 = vunpack.c.l.b16 %v442
  %v738 = vunpack.c.l.b16 %v443
  %v739 = vunpack.c.l.b16 %v444
  %v740 = vunpack.c.l.b16 %v445
  %v741 = vunpack.c.l.b16 %v446
  %v742 = vunpack.c.l.b16 %v447
  %v743 = vunpack.c.l.b16 %v448
  %v744 = vunpack.c.l.b16 %v449
  %v745 = vunpack.c.l.b16 %v450
  %v746 = vunpack.c.l.b16 %v451
  %v747 = vunpack.c.l.b16 %v452
  %v748 = vunpack.c.l.b16 %v453
  %v749 = vunpack.c.l.b16 %v454
  %v750 = vunpack.c.l.b16 %v455
  %v751 = vunpack.c.l.b16 %v456
  %v752 = vunpack.c.l.b16 %v457
  %v753 = vunpack.c.l.b16 %v458
  %v754 = vunpack.c.l.b16 %v459
  %v755 = vunpack.c.l.b16 %v460
  %v756 = vunpack.c.l.b16 %v461
  %v757 = vunpack.c.l.b16 %v462
  %v758 = vunpack.c.l.b16 %v463
  %v759 = vunpack.c.l.b16 %v464
  %v760 = vunpack.c.l.b16 %v465
  %v761 = vunpack.c.l.b16 %v466
  %v762 = vunpack.c.l.b16 %v467
  %v763 = vunpack.c.l.b16 %v468
  %v764 = vunpack.c.l.b16 %v469
  %v765 = vunpack.c.l.b16 %v470
  %v766 = vunpack.c.l.b16 %v471
  %v767 = vunpack.c.l.b16 %v472
  %v768 = vunpack.c.l.b16 %v473
  %v769 = vunpack.c.l.b16 %v474
  %v770 = vunpack.c.l.b16 %v475
  %v771 = vunpack.c.l.b16 %v476
  %v772 = vunpack.c.l.b16 %v477
  %v773 = vunpack.c.l.b16 %v478
  %v774 = vunpack.c.l.b16 %v479
  %v775 = vunpack.c.l.b16 %v480
  %v776 = vunpack.c.l.b16 %v481
  %v777 = vunpack.c.l.b16 %v482
  %v778 = vunpack.c.l.b16 %v483
  %v779 = vunpack.c.l.b16 %v484
  %v780 = vunpack.c.l.b16 %v485
  %v781 = vunpack.c.l.b16 %v486
  %v782 = vunpack.c.l.b16 %v487
  %v783 = vunpack.c.l.b16 %v488
  %v784 = vunpack.c.l.b16 %v489
  %v785 = vunpack.c.l.b16 %v490
  %v786 = vunpack.c.l.b16 %v491
  %v787 = vunpack.c.l.b16 %v492
  %v788 = vunpack.c.l.b16 %v493
  %v789 = vunpack.c.l.b16 %v494
  %v790 = vunpack.c.l.b16 %v495
  %v791 = vunpack.c.l.b16 %v496
  %v792 = vunpack.c.l.b16 %v497
  %v793 = vunpack.c.l.b16 %v498
  %v794 = vunpack.c.l.b16 %v499
  %v795 = vunpack.c.l.b16 %v500
  %v796 = vunpack.c.l.b16 %v501
  %v797 = vunpack.c.l.b16 %v502
  %v798 = vunpack.c.l.b16 %v503
  %v799 = vunpack.c.l.b16 %v504
  %v800 = vunpack.c.l.b16 %v505
  %v801 = vunpack.c.l.b16 %v506
  %v802 = vunpack.c.l.b16 %v507
  %v803 = vunpack.c.l.b16 %v508
  %v804 = vunpack.c.l.b16 %v509
  %v805 = vunpack.c.l.b16 %v510
  %v806 = vunpack.c.l.b16 %v511
  %v807 = vunpack.c.l.b16 %v512
  %v808 = vunpack.c.l.b16 %v513
  %v809 = vunpack.c.l.b16 %v514
  %v810 = vunpack.c.l.b16 %v515
  %v811 = vunpack.c.l.b16 %v516
  %v812 = vunpack.c.l.b16 %v517
  %v813 = vunpack.c.l.b16 %v518
  %v814 = vunpack.c.l.b16 %v519
  %v815 = vunpack.c.l.b16 %v520
  %v816 = vunpack.c.l.b16 %v521
  %v817 = vunpack.c.l.b16 %v522
  %v818 = vpack.c.b16 %v675, %v674
  %v819 = vpack.c.b16 %v677, %v676
  %v820 = vpack.c.b16 %v679, %v678
  %v821 = vpack.c.b16 %v681, %v680
  %v822 = vpack.c.b16 %v683, %v682
  %v823 = vpack.c.b16 %v685, %v684
  %v824 = vpack.c.b16 %v687, %v686
  %v825 = vpack.c.b16 %v689, %v688
  %v826 = vpack.c.b16 %v691, %v690
  %v827 = vpack.c.b16 %v693, %v692
  %v828 = vpack.c.b16 %v695, %v694
  %v829 = vpack.c.b16 %v697, %v696
  %v830 = vpack.c.b16 %v699, %v698
  %v831 = vpack.c.b16 %v701, %v700
  %v832 = vpack.c.b16 %v703, %v702
  %v833 = vpack.c.b16 %v705, %v704
  %v834 = vpack.c.b16 %v707, %v706
  %v835 = vpack.c.b16 %v709, %v708
  %v836 = vpack.c.b16 %v711, %v710
  %v837 = vpack.c.b16 %v713, %v712
  %v838 = vpack.c.b16 %v715, %v714
  %v839 = vpack.c.b16 %v717, %v716
  %v840 = vpack.c.b16 %v719, %v718
  %v841 = vpack.c.b16 %v721, %v720
  %v842 = vpack.c.b16 %v723, %v722
  %v843 = vpack.c.b16 %v725, %v724
  %v844 = vpack.c.b16 %v727, %v726
  %v845 = vpack.c.b16 %v729, %v728
  %v846 = vpack.c.b16 %v731, %v730
  %v847 = vpack.c.b16 %v733, %v732
  %v848 = vpack.c.b16 %v735, %v734
  %v849 = vpack.c.b16 %v737, %v736
  %v850 = vpack.c.b16 %v739, %v738
  %v851 = vpack.c.b16 %v741, %v740
  %v852 = vpack.c.b16 %v743, %v742
  %v853 = vpack.c.b16 %v745, %v744
  %v854 = vpack.c.b16 %v747, %v746
  %v855 = vpack.c.b16 %v749, %v748
  %v856 = vpack.c.b16 %v751, %v750
  %v857 = vpack.c.b16 %v753, %v752
  %v858 = vpack.c.b16 %v755, %v754
  %v859 = vpack.c.b16 %v757, %v756
  %v860 = vpack.c.b16 %v759, %v758
  %v861 = vpack.c.b16 %v761, %v760
  %v862 = vpack.c.b16 %v763, %v762
  %v863 = vpack.c.b16 %v765, %v764
  %v864 = vpack.c.b16 %v767, %v766
  %v865 = vpack.c.b16 %v769, %v768
  %v866 = vpack.c.b16 %v771, %v770
  %v867 = vpack.c.b16 %v773, %v772
  %v868 = vpack.c.b16 %v775, %v774
  %v869 = vpack.c.b16 %v777, %v776
  %v870 = vpack.c.b16 %v779, %v778
  %v871 = vpack.c.b16 %v781, %v780
  %v872 = vpack.c.b16 %v783, %v782
  %v873 = vpack.c.b16 %v785, %v784
  %v874 = vpack.c.b16 %v787, %v786
  %v875 = vpack.c.b16 %v789, %v788
  %v876 = vpack.c.b16 %v791, %v790
  %v877 = vpack.c.b16 %v793, %v792
  %v878 = vpack.c.b16 %v795, %v794
  %v879 = vpack.c.b16 %v797, %v796
  %v880 = vpack.c.b16 %v799, %v798
  %v881 = vpack.c.b16 %v801, %v800
  %v882 = vpack.c.b16 %v803, %v802
  %v883 = vpack.c.b16 %v805, %v804
  %v884 = vpack.c.b16 %v807, %v806
  %v885 = vpack.c.b16 %v809, %v808
  %v886 = vpack.c.b16 %v811, %v810
  %v887 = vpack.c.b16 %v813, %v812
  %v888 = vpack.c.b16 %v815, %v814
  %v889 = vpack.c.b16 %v817, %v816
  %962 = vmatprep.subr.bf16.mxu0 0
  %963 = vmatpush1.bf16.msra.mxu0 %v818
  %964 = vmatprep.subr.bf16.mxu0 0
  %965 = vmatpush1.bf16.msra.mxu0 %v819
  %966 = vmatprep.subr.bf16.mxu0 0
  %967 = vmatpush1.bf16.msra.mxu0 %v820
  %968 = vmatprep.subr.bf16.mxu0 0
  %969 = vmatpush1.bf16.msra.mxu0 %v821
  %970 = vmatprep.subr.bf16.mxu0 0
  %971 = vmatpush1.bf16.msra.mxu0 %v822
  %972 = vmatprep.subr.bf16.mxu0 0
  %973 = vmatpush1.bf16.msra.mxu0 %v823
  %974 = vmatprep.subr.bf16.mxu0 0
  %975 = vmatpush1.bf16.msra.mxu0 %v824
  %976 = vmatprep.subr.bf16.mxu0 0
  %977 = vmatpush1.bf16.msra.mxu0 %v825
  %978 = vmatprep.subr.bf16.mxu0 0
  %979 = vmatpush1.bf16.msra.mxu0 %v826
  %980 = vmatprep.subr.bf16.mxu0 0
  %981 = vmatpush1.bf16.msra.mxu0 %v827
  %982 = vmatprep.subr.bf16.mxu0 0
  %983 = vmatpush1.bf16.msra.mxu0 %v828
  %984 = vmatprep.subr.bf16.mxu0 0
  %985 = vmatpush1.bf16.msra.mxu0 %v829
  %986 = vmatprep.subr.bf16.mxu0 0
  %987 = vmatpush1.bf16.msra.mxu0 %v830
  %988 = vmatprep.subr.bf16.mxu0 0
  %989 = vmatpush1.bf16.msra.mxu0 %v831
  %990 = vmatprep.subr.bf16.mxu0 0
  %991 = vmatpush1.bf16.msra.mxu0 %v832
  %992 = vmatprep.subr.bf16.mxu0 0
  %993 = vmatpush1.bf16.msra.mxu0 %v833
  %994 = vmatprep.mubr.bf16.mxu0 %v362
  %995 = vmatmul.mubr.bf16.gmra.mrb[0].mxu0 %v361
  %v996 = vpop.f32.mrb[0].mxu0
  %v997 = vadd.f32 %v528, %v996
  %v998 = vpop.f32.mrb[0].mxu0
  %v999 = vpop.f32.mrb[0].mxu0
  %v1000 = vadd.f32 %v528, %v999
  %v1001 = vpop.f32.mrb[0].mxu0
  %1002 = vmatprep.mubr.bf16.mxu0 %v371
  %1003 = vmatmul.mubr.bf16.gmra.mrb[0].mxu0 %v370
  %v1004 = vpop.f32.mrb[0].mxu0
  %v1005 = vadd.f32 %v528, %v1004
  %v1006 = vpop.f32.mrb[0].mxu0
  %v1007 = vpop.f32.mrb[0].mxu0
  %v1008 = vpop.f32.mrb[0].mxu0
  %1009 = vdwg.mxu0
  %1010 = vmatprep.subr.bf16.mxu0 0
  %1011 = vmatpush1.bf16.msra.mxu0 %v834
  %1012 = vmatprep.subr.bf16.mxu0 0
  %1013 = vmatpush1.bf16.msra.mxu0 %v835
  %1014 = vmatprep.subr.bf16.mxu0 0
  %1015 = vmatpush1.bf16.msra.mxu0 %v836
  %1016 = vmatprep.subr.bf16.mxu0 0
  %1017 = vmatpush1.bf16.msra.mxu0 %v837
  %1018 = vmatprep.subr.bf16.mxu0 0
  %1019 = vmatpush1.bf16.msra.mxu0 %v838
  %1020 = vmatprep.subr.bf16.mxu0 0
  %1021 = vmatpush1.bf16.msra.mxu0 %v839
  %1022 = vmatprep.subr.bf16.mxu0 0
  %1023 = vmatpush1.bf16.msra.mxu0 %v840
  %1024 = vmatprep.subr.bf16.mxu0 0
  %1025 = vmatpush1.bf16.msra.mxu0 %v841
  %1026 = vmatprep.subr.bf16.mxu0 0
  %1027 = vmatpush1.bf16.msra.mxu0 %v842
  %1028 = vmatprep.subr.bf16.mxu0 0
  %1029 = vmatpush1.bf16.msra.mxu0 %v843
  %1030 = vmatprep.subr.bf16.mxu0 0
  %1031 = vmatpush1.bf16.msra.mxu0 %v844
  %1032 = vmatprep.subr.bf16.mxu0 0
  %1033 = vmatpush1.bf16.msra.mxu0 %v845
  %1034 = vmatprep.subr.bf16.mxu0 0
  %1035 = vmatpush1.bf16.msra.mxu0 %v846
  %1036 = vmatprep.subr.bf16.mxu0 0
  %1037 = vmatpush1.bf16.msra.mxu0 %v847
  %1038 = vmatprep.subr.bf16.mxu0 0
  %1039 = vmatpush1.bf16.msra.mxu0 %v848
  %1040 = vmatprep.subr.bf16.mxu0 0
  %1041 = vmatpush1.bf16.msra.mxu0 %v849
  %1042 = vmatprep.mubr.bf16.mxu0 %v364
  %1043 = vmatmul.mubr.bf16.gmra.mrb[0].mxu0 %v363
  %v1044 = vpop.f32.mrb[0].mxu0
  %v1045 = vadd.f32 %v997, %v1044
  %v1046 = vpop.f32.mrb[0].mxu0
  %v1047 = vpop.f32.mrb[0].mxu0
  %v1048 = vadd.f32 %v1000, %v1047
  %v1049 = vpop.f32.mrb[0].mxu0
  %1050 = vmatprep.mubr.bf16.mxu0 %v373
  %1051 = vmatmul.mubr.bf16.gmra.mrb[0].mxu0 %v372
  %v1052 = vpop.f32.mrb[0].mxu0
  %v1053 = vadd.f32 %v1005, %v1052
  %v1054 = vpop.f32.mrb[0].mxu0
  %v1055 = vpop.f32.mrb[0].mxu0
  %v1056 = vpop.f32.mrb[0].mxu0
  %1057 = vdwg.mxu0
  %1058 = vmatprep.subr.bf16.mxu0 0
  %1059 = vmatpush1.bf16.msra.mxu0 %v850
  %1060 = vmatprep.subr.bf16.mxu0 0
  %1061 = vmatpush1.bf16.msra.mxu0 %v851
  %1062 = vmatprep.subr.bf16.mxu0 0
  %1063 = vmatpush1.bf16.msra.mxu0 %v852
  %1064 = vmatprep.subr.bf16.mxu0 0
  %1065 = vmatpush1.bf16.msra.mxu0 %v853
  %1066 = vmatprep.subr.bf16.mxu0 0
  %1067 = vmatpush1.bf16.msra.mxu0 %v854
  %1068 = vmatprep.subr.bf16.mxu0 0
  %1069 = vmatpush1.bf16.msra.mxu0 %v855
  %1070 = vmatprep.subr.bf16.mxu0 0
  %1071 = vmatpush1.bf16.msra.mxu0 %v856
  %1072 = vmatprep.subr.bf16.mxu0 0
  %1073 = vmatpush1.bf16.msra.mxu0 %v857
  %1074 = vmatprep.subr.bf16.mxu0 0
  %1075 = vmatpush1.bf16.msra.mxu0 %v858
  %1076 = vmatprep.subr.bf16.mxu0 0
  %1077 = vmatpush1.bf16.msra.mxu0 %v859
  %1078 = vmatprep.subr.bf16.mxu0 0
  %1079 = vmatpush1.bf16.msra.mxu0 %v860
  %1080 = vmatprep.subr.bf16.mxu0 0
  %1081 = vmatpush1.bf16.msra.mxu0 %v861
  %1082 = vmatprep.subr.bf16.mxu0 0
  %1083 = vmatpush1.bf16.msra.mxu0 %v862
  %1084 = vmatprep.subr.bf16.mxu0 0
  %1085 = vmatpush1.bf16.msra.mxu0 %v863
  %1086 = vmatprep.subr.bf16.mxu0 0
  %1087 = vmatpush1.bf16.msra.mxu0 %v864
  %1088 = vmatprep.subr.bf16.mxu0 0
  %1089 = vmatpush1.bf16.msra.mxu0 %v865
  %1090 = vmatprep.mubr.bf16.mxu0 %v366
  %1091 = vmatmul.mubr.bf16.gmra.mrb[0].mxu0 %v365
  %v1092 = vpop.f32.mrb[0].mxu0
  %v1093 = vadd.f32 %v1045, %v1092
  %v1094 = vpop.f32.mrb[0].mxu0
  %v1095 = vpop.f32.mrb[0].mxu0
  %v1096 = vadd.f32 %v1048, %v1095
  %v1097 = vpop.f32.mrb[0].mxu0
  %1098 = vmatprep.mubr.bf16.mxu0 %v375
  %1099 = vmatmul.mubr.bf16.gmra.mrb[0].mxu0 %v374
  %v1100 = vpop.f32.mrb[0].mxu0
  %v1101 = vadd.f32 %v1053, %v1100
  %v1102 = vpop.f32.mrb[0].mxu0
  %v1103 = vpop.f32.mrb[0].mxu0
  %v1104 = vpop.f32.mrb[0].mxu0
  %1105 = vdwg.mxu0
  %1106 = vmatprep.subr.bf16.mxu0 0
  %1107 = vmatpush1.bf16.msra.mxu0 %v866
  %1108 = vmatprep.subr.bf16.mxu0 0
  %1109 = vmatpush1.bf16.msra.mxu0 %v867
  %1110 = vmatprep.subr.bf16.mxu0 0
  %1111 = vmatpush1.bf16.msra.mxu0 %v868
  %1112 = vmatprep.subr.bf16.mxu0 0
  %1113 = vmatpush1.bf16.msra.mxu0 %v869
  %1114 = vmatprep.subr.bf16.mxu0 0
  %1115 = vmatpush1.bf16.msra.mxu0 %v870
  %1116 = vmatprep.subr.bf16.mxu0 0
  %1117 = vmatpush1.bf16.msra.mxu0 %v871
  %1118 = vmatprep.subr.bf16.mxu0 0
  %1119 = vmatpush1.bf16.msra.mxu0 %v872
  %1120 = vmatprep.subr.bf16.mxu0 0
  %1121 = vmatpush1.bf16.msra.mxu0 %v873
  %1122 = vmatprep.subr.bf16.mxu0 0
  %1123 = vmatpush1.bf16.msra.mxu0 %v874
  %1124 = vmatprep.subr.bf16.mxu0 0
  %1125 = vmatpush1.bf16.msra.mxu0 %v875
  %1126 = vmatprep.subr.bf16.mxu0 0
  %1127 = vmatpush1.bf16.msra.mxu0 %v876
  %1128 = vmatprep.subr.bf16.mxu0 0
  %1129 = vmatpush1.bf16.msra.mxu0 %v877
  %1130 = vmatprep.subr.bf16.mxu0 0
  %1131 = vmatpush1.bf16.msra.mxu0 %v878
  %1132 = vmatprep.subr.bf16.mxu0 0
  %1133 = vmatpush1.bf16.msra.mxu0 %v879
  %1134 = vmatprep.subr.bf16.mxu0 0
  %1135 = vmatpush1.bf16.msra.mxu0 %v880
  %1136 = vmatprep.subr.bf16.mxu0 0
  %1137 = vmatpush1.bf16.msra.mxu0 %v881
  %1138 = vmatprep.mubr.bf16.mxu0 %v368
  %1139 = vmatmul.mubr.bf16.gmra.mrb[0].mxu0 %v367
  %v1140 = vpop.f32.mrb[0].mxu0
  %v1141 = vadd.f32 %v1093, %v1140
  %v1142 = vpop.f32.mrb[0].mxu0
  %v1143 = vpop.f32.mrb[0].mxu0
  %v1144 = vadd.f32 %v1096, %v1143
  %v1145 = vpop.f32.mrb[0].mxu0
  %1146 = vmatprep.mubr.bf16.mxu0 %v377
  %1147 = vmatmul.mubr.bf16.gmra.mrb[0].mxu0 %v376
  %v1148 = vpop.f32.mrb[0].mxu0
  %v1149 = vadd.f32 %v1101, %v1148
  %v1150 = vpop.f32.mrb[0].mxu0
  %v1151 = vpop.f32.mrb[0].mxu0
  %v1152 = vpop.f32.mrb[0].mxu0
  %1153 = vdwg.mxu0
  %1154 = vmatprep.subr.bf16.mxu0 0
  %1155 = vmatpush1.bf16.msra.mxu0 %v882
  %1156 = vmatprep.subr.bf16.mxu0 0
  %1157 = vmatpush1.bf16.msra.mxu0 %v883
  %1158 = vmatprep.subr.bf16.mxu0 0
  %1159 = vmatpush1.bf16.msra.mxu0 %v884
  %1160 = vmatprep.subr.bf16.mxu0 0
  %1161 = vmatpush1.bf16.msra.mxu0 %v885
  %1162 = vmatprep.subr.bf16.mxu0 0
  %1163 = vmatpush1.bf16.msra.mxu0 %v886
  %1164 = vmatprep.subr.bf16.mxu0 0
  %1165 = vmatpush1.bf16.msra.mxu0 %v887
  %1166 = vmatprep.subr.bf16.mxu0 0
  %1167 = vmatpush1.bf16.msra.mxu0 %v888
  %1168 = vmatprep.subr.bf16.mxu0 0
  %1169 = vmatpush1.bf16.msra.mxu0 %v889
  %1170 = vmatprep.subr.bf16.mxu0 0
  %1171 = vmatpush1.bf16.msra.mxu0 0
  %1172 = vmatprep.subr.bf16.mxu0 0
  %1173 = vmatpush1.bf16.msra.mxu0 0
  %1174 = vmatprep.subr.bf16.mxu0 0
  %1175 = vmatpush1.bf16.msra.mxu0 0
  %1176 = vmatprep.subr.bf16.mxu0 0
  %1177 = vmatpush1.bf16.msra.mxu0 0
  %1178 = vmatprep.subr.bf16.mxu0 0
  %1179 = vmatpush1.bf16.msra.mxu0 0
  %1180 = vmatprep.subr.bf16.mxu0 0
  %1181 = vmatpush1.bf16.msra.mxu0 0
  %1182 = vmatprep.subr.bf16.mxu0 0
  %1183 = vmatpush1.bf16.msra.mxu0 0
  %1184 = vmatprep.subr.bf16.mxu0 0
  %1185 = vmatpush1.bf16.msra.mxu0 0
  %1186 = vmatprep.mubr.bf16.mxu0 0
  %1187 = vmatmul.mubr.bf16.gmra.mrb[0].mxu0 %v369
  %v1188 = vpop.f32.mrb[0].mxu0
  %v1189 = vadd.f32 %v1141, %v1188
  %v1190 = vpop.f32.mrb[0].mxu0
  %v1191 = vpop.f32.mrb[0].mxu0
  %v1192 = vadd.f32 %v1144, %v1191
  %v1193 = vpop.f32.mrb[0].mxu0
  %1194 = vmatprep.mubr.bf16.mxu0 0
  %1195 = vmatmul.mubr.bf16.gmra.mrb[0].mxu0 %v378
  %v1196 = vpop.f32.mrb[0].mxu0
  %v1197 = vadd.f32 %v1149, %v1196
  %v1198 = vpop.f32.mrb[0].mxu0
  %v1199 = vpop.f32.mrb[0].mxu0
  %v1200 = vpop.f32.mrb[0].mxu0
  %1201 = vdwg.mxu0
  %v1202 = vmax.f32 %v1189, 0.0
  %v1203 = vmax.f32 %v1192, 0.0
  %v1204 = vmax.f32 %v1197, 0.0
  %1205 = vst [vmem:[%s5] sm:$0xff] %v1202
  %1206 = vst [vmem:[%s5 + $0x8] sm:$0xff] %v1203
  %1207 = vst [vmem:[%s5 + $0x10] sm:$0xff] %v1204
  // Predicated region
  $region22: #{encoder2conv_forward.1} parent=0 // pred_check
    _
  $region23: #{encoder2conv_forward.1} parent=0 // pred_check_branch
    %1209 = sbr.rel (0) target = $region25
  $region24: #{encoder2conv_forward.1} parent=0 // pred_region
    _
  $region25: #{encoder2conv_forward.1} parent=0 // pred_fallthru
    _
  // Predicated region
  $region26: #{encoder2conv_forward.1} parent=0 // pred_check
    _
  $region27: #{encoder2conv_forward.1} parent=0 // pred_check_branch
    %1211 = sbr.rel (0) target = $region29
  $region28: #{encoder2conv_forward.1} parent=0 // pred_region
    _
  $region29: #{encoder2conv_forward.1} parent=0 // pred_fallthru
    _

</llo_original>
